<compile_context>
chip_gen: v7x
topology: tpu7x:2x2x1
jax: 0.10.0
libtpu: 0.0.40
codegen_flags: <defaults>
</compile_context>

<pallas_src>
import functools

import jax
import jax.numpy as jnp
import numpy as np
from jax import lax
from jax.experimental import pallas as pl
from jax.experimental.pallas import tpu as pltpu

_LANE = 128
_SUB = 8
_CHUNK = _SUB * _LANE                 # 1024: keeps the row count a multiple of 8
_VMEM_LIMIT = 32 * 1024 * 1024        # safe on v5e (128 MiB phys), v6e (128), v7x (64)


# ----------------------- BCEWithLogitsLoss kernel (n_classes == 1) -----------
def _bce_kernel(*refs, n_valid, scale):
    if len(refs) == 5:
        x_ref, y_ref, w_ref, out_ref, acc_ref = refs
    else:
        x_ref, y_ref, out_ref, acc_ref = refs
        w_ref = None

    step = pl.program_id(0)

    @pl.when(step == 0)
    def _():
        acc_ref[...] = jnp.zeros_like(acc_ref)

    x = x_ref[...].astype(jnp.float32)            # (block_rows, 128)
    y = y_ref[...].astype(jnp.float32)
    block_rows = x.shape[0]

    # numerically stable: w*(max(x,0) - x*y + log1p(exp(-|x|)))
    per_elem = jnp.maximum(x, 0.0) - x * y + jnp.log1p(jnp.exp(-jnp.abs(x)))
    if w_ref is not None:
        per_elem = per_elem * w_ref[...].astype(jnp.float32)

    # Mask flat-padding / ragged-tail elements by global flat index.
    row = lax.broadcasted_iota(jnp.int32, x.shape, 0) + step * block_rows
    lane = lax.broadcasted_iota(jnp.int32, x.shape, 1)
    per_elem = jnp.where(row * _LANE + lane < n_valid, per_elem, 0.0)

    # Pure vector adds per block; the single cross-lane reduce happens once at the end.
    acc_ref[...] += per_elem

    @pl.when(step == pl.num_programs(0) - 1)
    def _():
        out_ref[0, 0] = jnp.sum(acc_ref[...]) * np.float32(scale)


def bce_with_logits_loss(logits, labels, weight, *, block_rows=1024):
    """nn.BCEWithLogitsLoss(weight=weight)(logits, labels) with mean reduction."""
    n_valid = int(np.prod(logits.shape))

    def to_rows(a):
        a = a.reshape(-1)
        pad = (-n_valid) % _CHUNK
        if pad:                                    # only ragged sizes pay a copy
            a = jnp.pad(a, (0, pad))
        return a.reshape(-1, _LANE)                # lane-dense, original dtype kept

    x2 = to_rows(jnp.asarray(logits))
    y2 = to_rows(jnp.asarray(labels))
    rows = x2.shape[0]                             # always a multiple of 8
    br = min(max(_SUB, (block_rows // _SUB) * _SUB), rows)
    grid = (pl.cdiv(rows, br),)

    arrays = [x2, y2]
    specs = [pl.BlockSpec((br, _LANE), lambda i: (i, 0)),
             pl.BlockSpec((br, _LANE), lambda i: (i, 0))]

    if np.size(weight) == 1:
        # Scalar weight: fold into the final scale -> no extra HBM stream.
        scale = float(np.asarray(weight).reshape(()).astype(np.float64)) / n_valid
    else:
        w = jnp.asarray(weight)
        if w.shape != tuple(logits.shape):
            # TODO(synk): partially-broadcast weights are materialized once here.
            w = jnp.broadcast_to(w, logits.shape)
        arrays.append(to_rows(w))
        specs.append(pl.BlockSpec((br, _LANE), lambda i: (i, 0)))
        scale = 1.0 / n_valid

    kernel = functools.partial(_bce_kernel, n_valid=n_valid, scale=scale)
    out = pl.pallas_call(
        kernel,
        out_shape=jax.ShapeDtypeStruct((1, 1), jnp.float32),
        grid=grid,
        in_specs=specs,
        out_specs=pl.BlockSpec(memory_space=pltpu.MemorySpace.SMEM),
        scratch_shapes=[pltpu.VMEM((br, _LANE), jnp.float32)],
        compiler_params=pltpu.CompilerParams(
            dimension_semantics=("arbitrary",),
            vmem_limit_bytes=_VMEM_LIMIT),
    )(*arrays)
    return out[0, 0]


# ----------------------- CrossEntropyLoss kernel (n_classes > 1) -------------
def _ce_kernel(x_ref, lbl_ref, out_ref, acc_ref, *, n_classes, hw, n_rows):
    n_i = pl.program_id(0)
    t_i = pl.program_id(1)

    @pl.when((n_i == 0) & (t_i == 0))
    def _():
        acc_ref[...] = jnp.zeros_like(acc_ref)

    x = x_ref[0].astype(jnp.float32)              # (C, tile_hw), lane-dense
    lbl = lbl_ref[0]                              # (1, tile_hw) int32
    tile_hw = x.shape[-1]

    # Class reduction as a small unrolled loop over the C sublane rows (VPU work).
    m = x[0:1, :]
    for c in range(1, n_classes):
        m = jnp.maximum(m, x[c:c + 1, :])
    se = jnp.zeros_like(m)
    picked = jnp.zeros_like(m)
    for c in range(n_classes):
        xc = x[c:c + 1, :]
        se = se + jnp.exp(xc - m)
        picked = picked + jnp.where(lbl == c, xc, 0.0)
    # TODO(synk): out-of-range labels silently contribute +logsumexp (PyTorch raises).
    loss = m + jnp.log(se) - picked               # (1, tile_hw)

    # Mask the spatial tail of the last tile.
    col = lax.broadcasted_iota(jnp.int32, loss.shape, 1) + t_i * tile_hw
    loss = jnp.where(col < hw, loss, 0.0)

    acc_ref[...] += loss

    @pl.when((n_i == pl.num_programs(0) - 1) & (t_i == pl.num_programs(1) - 1))
    def _():
        out_ref[0, 0] = jnp.sum(acc_ref[...]) * np.float32(1.0 / n_rows)


def cross_entropy_loss(logits, labels, *, tile_hw=1024):
    """nn.CrossEntropyLoss()(logits, labels), NCHW-style logits, mean reduction."""
    N, C = logits.shape[0], logits.shape[1]
    HW = int(np.prod(logits.shape[2:])) if logits.ndim > 2 else 1
    x = jnp.asarray(logits).reshape(N, C, HW)       # contiguous regroup, no transpose
    lbl = jnp.asarray(labels).reshape(N, 1, HW).astype(jnp.int32)

    thw = HW if HW <= tile_hw else (tile_hw // _LANE) * _LANE
    grid = (N, pl.cdiv(HW, thw))

    kernel = functools.partial(_ce_kernel, n_classes=C, hw=HW, n_rows=N * HW)
    out = pl.pallas_call(
        kernel,
        out_shape=jax.ShapeDtypeStruct((1, 1), jnp.float32),
        grid=grid,
        in_specs=[
            pl.BlockSpec((1, C, thw), lambda n, t: (n, 0, t)),
            pl.BlockSpec((1, 1, thw), lambda n, t: (n, 0, t)),
        ],
        out_specs=pl.BlockSpec(memory_space=pltpu.MemorySpace.SMEM),
        scratch_shapes=[pltpu.VMEM((1, thw), jnp.float32)],
        compiler_params=pltpu.CompilerParams(
            dimension_semantics=("arbitrary", "arbitrary"),
            vmem_limit_bytes=_VMEM_LIMIT),
    )(x, lbl)
    return out[0, 0]


# ----------------------- Module wrapper ---------------------------------------
class BCELoss:
    """JAX/Pallas port of utils.Losses.BCELoss."""

    def __init__(self, n_classes, batch_weights):
        self.n_classes = n_classes
        self.batch_weights = (None if n_classes > 1
                              else np.asarray(batch_weights, dtype=np.float32))

    def __call__(self, output, labels, train=True):
        if self.n_classes > 1:
            return cross_entropy_loss(output, labels)
        return bce_with_logits_loss(output, labels, self.batch_weights)


# ----------------------- Demo / self-check ------------------------------------
if __name__ == "__main__":
    key = jax.random.PRNGKey(0)
    k1, k2, k3, k4, k5 = jax.random.split(key, 5)

    N, C1, H, W = 2, 1, 16, 16
    logits_b = jax.random.normal(k1, (N, C1, H, W), dtype=jnp.float32)
    labels_b = jax.random.bernoulli(k2, 0.5, (N, C1, H, W)).astype(jnp.float32)
    batch_weights = np.asarray(
        jax.random.uniform(k3, (N, C1, H, W), minval=0.5, maxval=1.5), dtype=np.float32)

    def bce_ref(x, y, w):
        return jnp.mean(jnp.asarray(w)
                        * (jnp.maximum(x, 0.0) - x * y + jnp.log1p(jnp.exp(-jnp.abs(x)))))

    # --- binary path, elementwise weight ------------------------------------
    crit_bin = BCELoss(n_classes=1, batch_weights=batch_weights)
    loss_bin = jax.block_until_ready(crit_bin(logits_b, labels_b))
    assert np.allclose(np.asarray(loss_bin),
                       np.asarray(bce_ref(logits_b, labels_b, batch_weights)),
                       rtol=1e-5, atol=1e-5)

    # --- binary path, scalar weight (folded into scale, no third stream) ----
    crit_sc = BCELoss(n_classes=1, batch_weights=np.asarray(0.7, dtype=np.float32))
    loss_sc = jax.block_until_ready(crit_sc(logits_b, labels_b))
    assert np.allclose(np.asarray(loss_sc),
                       np.asarray(bce_ref(logits_b, labels_b, 0.7)),
                       rtol=1e-5, atol=1e-5)

    # --- multiclass path: CrossEntropyLoss ----------------------------------
    NC = 4
    logits_m = jax.random.normal(k4, (N, NC, H, W), dtype=jnp.float32)
    labels_m = jax.random.randint(k5, (N, H, W), 0, NC, dtype=jnp.int32)

    crit_mc = BCELoss(n_classes=NC, batch_weights=batch_weights)
    loss_mc = jax.block_until_ready(crit_mc(logits_m, labels_m))

    xr = jnp.transpose(logits_m, (0, 2, 3, 1)).reshape(-1, NC)
    lr = labels_m.reshape(-1)
    lse = jax.scipy.special.logsumexp(xr, axis=-1)
    ref_mc = jnp.mean(lse - xr[jnp.arange(xr.shape[0]), lr])
    assert np.allclose(np.asarray(loss_mc), np.asarray(ref_mc), rtol=1e-5, atol=1e-5)

    print("KERNEL_OK")
</pallas_src>

<mosaic_0001>
module attributes {stable_mosaic.version = 11 : i64} {
  func.func @_bce_kernel(%arg0: i32, %arg1: memref<8x128xf32, #tpu.memory_space<vmem>>, %arg2: memref<8x128xf32, #tpu.memory_space<vmem>>, %arg3: memref<8x128xf32, #tpu.memory_space<vmem>>, %arg4: memref<1x1xf32, #tpu.memory_space<smem>>, %arg5: memref<8x128xf32, #tpu.memory_space<vmem>>) attributes {dimension_semantics = [#tpu.dimension_semantics<arbitrary>], iteration_bounds = array<i64: 1>, scalar_prefetch = 0 : i64, scratch_operands = 1 : i64, tpu.core_type = #tpu.core_type<tc>, window_params = [{transform_indices = @transform_0, window_bounds = array<i64: 8, 128>}, {transform_indices = @transform_1, window_bounds = array<i64: 8, 128>}, {transform_indices = @transform_2, window_bounds = array<i64: 8, 128>}, {transform_indices = @transform_3, window_bounds = array<i64: 1, 1>}]} {
    %c0_i32 = arith.constant 0 : i32
    %0 = arith.cmpi eq, %arg0, %c0_i32 : i32
    %1 = arith.extui %0 : i1 to i32
    %c0_i32_0 = arith.constant 0 : i32
    %2 = arith.cmpi ne, %1, %c0_i32_0 : i32
    scf.if %2 {
      %cst_14 = arith.constant 0.000000e+00 : f32
      %35 = vector.broadcast %cst_14 : f32 to vector<8x128xf32>
      %c0_15 = arith.constant 0 : index
      %c0_16 = arith.constant 0 : index
      %36 = vector.load %arg5[%c0_15, %c0_16] : memref<8x128xf32, #tpu.memory_space<vmem>>, vector<8x128xf32>
      tpu.vector_store %arg5[%c0_15, %c0_16], %35 {strides = array<i32>} : memref<8x128xf32, #tpu.memory_space<vmem>>, vector<8x128xf32>,
    } else {
    }
    %c0 = arith.constant 0 : index
    %c0_1 = arith.constant 0 : index
    %3 = vector.load %arg1[%c0, %c0_1] : memref<8x128xf32, #tpu.memory_space<vmem>>, vector<8x128xf32>
    %c0_2 = arith.constant 0 : index
    %c0_3 = arith.constant 0 : index
    %4 = vector.load %arg2[%c0_2, %c0_3] : memref<8x128xf32, #tpu.memory_space<vmem>>, vector<8x128xf32>
    %cst = arith.constant 0.000000e+00 : f32
    %5 = vector.broadcast %cst : f32 to vector<8x128xf32>
    %6 = arith.maximumf %3, %5 : vector<8x128xf32>
    %7 = arith.mulf %3, %4 : vector<8x128xf32>
    %8 = arith.subf %6, %7 : vector<8x128xf32>
    %9 = math.absf %3 : vector<8x128xf32>
    %cst_4 = arith.constant 0.000000e+00 : f32
    %10 = vector.broadcast %cst_4 : f32 to vector<8x128xf32>
    %11 = arith.subf %10, %9 : vector<8x128xf32>
    %12 = math.exp %11 : vector<8x128xf32>
    %13 = math.log1p %12 : vector<8x128xf32>
    %14 = arith.addf %8, %13 : vector<8x128xf32>
    %c0_5 = arith.constant 0 : index
    %c0_6 = arith.constant 0 : index
    %15 = vector.load %arg3[%c0_5, %c0_6] : memref<8x128xf32, #tpu.memory_space<vmem>>, vector<8x128xf32>
    %16 = arith.mulf %14, %15 : vector<8x128xf32>
    %17 = tpu.iota {dimensions = array<i32: 0>} : vector<8x128xi32>
    %c8_i32 = arith.constant 8 : i32
    %18 = arith.muli %arg0, %c8_i32 : i32
    %19 = vector.broadcast %18 : i32 to vector<8x128xi32>
    %20 = arith.addi %17, %19 : vector<8x128xi32>
    %21 = tpu.iota {dimensions = array<i32: 1>} : vector<8x128xi32>
    %c128_i32 = arith.constant 128 : i32
    %22 = vector.broadcast %c128_i32 : i32 to vector<8x128xi32>
    %23 = arith.muli %20, %22 : vector<8x128xi32>
    %24 = arith.addi %23, %21 : vector<8x128xi32>
    %c512_i32 = arith.constant 512 : i32
    %25 = vector.broadcast %c512_i32 : i32 to vector<8x128xi32>
    %26 = arith.cmpi slt, %24, %25 : vector<8x128xi32>
    %cst_7 = arith.constant 0.000000e+00 : f32
    %27 = vector.broadcast %cst_7 : f32 to vector<8x128xf32>
    %28 = arith.select %26, %16, %27 : vector<8x128xi1>, vector<8x128xf32>
    %c0_8 = arith.constant 0 : index
    %c0_9 = arith.constant 0 : index
    %29 = vector.load %arg5[%c0_8, %c0_9] : memref<8x128xf32, #tpu.memory_space<vmem>>, vector<8x128xf32>
    %30 = arith.addf %29, %28 : vector<8x128xf32>
    %c0_10 = arith.constant 0 : index
    %c0_11 = arith.constant 0 : index
    %31 = vector.load %arg5[%c0_10, %c0_11] : memref<8x128xf32, #tpu.memory_space<vmem>>, vector<8x128xf32>
    tpu.vector_store %arg5[%c0_10, %c0_11], %30 {strides = array<i32>} : memref<8x128xf32, #tpu.memory_space<vmem>>, vector<8x128xf32>,
    %c0_i32_12 = arith.constant 0 : i32
    %32 = arith.cmpi eq, %arg0, %c0_i32_12 : i32
    %33 = arith.extui %32 : i1 to i32
    %c0_i32_13 = arith.constant 0 : i32
    %34 = arith.cmpi ne, %33, %c0_i32_13 : i32
    scf.if %34 {
      %c0_14 = arith.constant 0 : index
      %c0_15 = arith.constant 0 : index
      %35 = vector.load %arg5[%c0_14, %c0_15] : memref<8x128xf32, #tpu.memory_space<vmem>>, vector<8x128xf32>
      %36 = vector.shape_cast %35 : vector<8x128xf32> to vector<1x8x128xf32>
      %cst_16 = arith.constant dense<0.000000e+00> : vector<1xf32>
      %37 = vector.multi_reduction <add>, %36, %cst_16 [1, 2] : vector<1x8x128xf32> to vector<1xf32>
      %38 = vector.shape_cast %37 : vector<1xf32> to vector<1x1x1xf32>
      %39 = vector.extract %38[0, 0, 0] : f32 from vector<1x1x1xf32>
      %cst_17 = arith.constant 0.001953125 : f32
      %40 = arith.mulf %39, %cst_17 : f32
      %c0_18 = arith.constant 0 : index
      %c0_19 = arith.constant 0 : index
      %41 = memref.load %arg4[%c0_18, %c0_19] : memref<1x1xf32, #tpu.memory_space<smem>>
      memref.store %40, %arg4[%c0_18, %c0_19] : memref<1x1xf32, #tpu.memory_space<smem>>
    } else {
    }
    return
  }
  func.func @transform_0(%arg0: i32) -> (i32, i32) {
    %c0_i32 = arith.constant 0 : i32
    %c0_i32_0 = arith.constant 0 : i32
    return %arg0, %c0_i32 : i32, i32
  }
  func.func @transform_1(%arg0: i32) -> (i32, i32) {
    %c0_i32 = arith.constant 0 : i32
    %c0_i32_0 = arith.constant 0 : i32
    return %arg0, %c0_i32 : i32, i32
  }
  func.func @transform_2(%arg0: i32) -> (i32, i32) {
    %c0_i32 = arith.constant 0 : i32
    %c0_i32_0 = arith.constant 0 : i32
    return %arg0, %c0_i32 : i32, i32
  }
  func.func @transform_3(%arg0: i32) -> (i32, i32) {
    %c0_i32 = arith.constant 0 : i32
    %c0_i32_0 = arith.constant 0 : i32
    %c0_i32_1 = arith.constant 0 : i32
    return %c0_i32, %c0_i32_0 : i32, i32
  }
}

</mosaic_0001>

<llo_original>
// kernel: tpu_custom_call.1
$region0: #{tpu_custom_call.1}
  #allocation0 [shape = 'u32[]', space=smem, size = 0x4, offset = 0x4, fixed_abs, tag = 'smem constant byte address 0x4 - core index']
  #allocation1 [shape = 'u32[144,128]{1,0:T(1,128)}', space=vmem, size = 0x12000, scoped, tag = 'internal scratch']
  #allocation2 [shape = 'f32[8,128]{1,0:T(8,128)}', space=vmem, size = 0x1000, scoped, tag = 'scratch operand']
  %s0 = inlined_call_operand.hbm [shape: f32[8,128], index: 0, kind: input, shape index: {}]
  %s1 = inlined_call_operand.hbm [shape: f32[8,128], index: 1, kind: input, shape index: {}]
  %s2 = inlined_call_operand.hbm [shape: f32[8,128], index: 2, kind: input, shape index: {}]
  %s3 = inlined_call_operand.hbm [shape: f32[1,1], index: 3, kind: output, shape index: {}]
  %s4 = sld [smem:[#allocation0]]
  $region42: #{tpu_custom_call.1} parent=0
    _
  %s6 = ssub.s32 1, %s4
  %s7 = scalar_select 0, %s6, %s4
  $region1: #{tpu_custom_call.1} parent=0
    #allocation3 [shape = 'u8[4096]{0}', space=vmem, size = 0x1000, scoped, tag = 'input window, operand 0, single buffered']
    #allocation4 [shape = 's32[1]{0}', space=sflag, size = 0x4, scoped, tag = 'scoped memory for tpu_custom_call.1']
    #allocation5 [shape = 's32[1]{0}', space=sflag, size = 0x4, scoped, tag = 'scoped memory for tpu_custom_call.1']
    #allocation6 [shape = 'u8[4096]{0}', space=vmem, size = 0x1000, scoped, tag = 'input window, operand 1, single buffered']
    #allocation7 [shape = 's32[1]{0}', space=sflag, size = 0x4, scoped, tag = 'scoped memory for tpu_custom_call.1']
    #allocation8 [shape = 'u8[4096]{0}', space=vmem, size = 0x1000, scoped, tag = 'input window, operand 2, single buffered']
    #allocation9 [shape = 'u8[512]{0}', space=smem, size = 0x200, scoped, tag = 'output window, operand 0, single buffered']
    %8 = vsyncpa [#allocation4], 0
    %9 = vsyncpa [#allocation7], 0
    %10 = vsyncpa [#allocation5], 0
    // Predicated region
    $region2: #{tpu_custom_call.1} parent=1 // pred_check
      _
    $region3: #{tpu_custom_call.1} parent=1 // pred_check_branch
      %12 = sbr.rel (0) target = $region5
    $region4: #{tpu_custom_call.1} parent=1 // pred_region
      %s14 = ssub.s32 128, 128
      %15 = vsyncadd [#allocation4], %s14
      %s17 = sshll.u32 [#allocation3], 4
      %s18 = int_to_ptr.vmem [resolvable:$true] %s17
      %20 = dma.hbm_to_vmem [thread:$0]  %s0, 128, %s18, [#allocation4]
    $region5: #{tpu_custom_call.1} parent=1 // pred_fallthru
      _
    // Predicated region
    $region6: #{tpu_custom_call.1} parent=1 // pred_check
      _
    $region7: #{tpu_custom_call.1} parent=1 // pred_check_branch
      %22 = sbr.rel (0) target = $region9
    $region8: #{tpu_custom_call.1} parent=1 // pred_region
      %s24 = ssub.s32 128, 128
      %25 = vsyncadd [#allocation7], %s24
      %s27 = sshll.u32 [#allocation6], 4
      %s28 = int_to_ptr.vmem [resolvable:$true] %s27
      %30 = dma.hbm_to_vmem [thread:$0]  %s1, 128, %s28, [#allocation7]
    $region9: #{tpu_custom_call.1} parent=1 // pred_fallthru
      _
    // Predicated region
    $region10: #{tpu_custom_call.1} parent=1 // pred_check
      _
    $region11: #{tpu_custom_call.1} parent=1 // pred_check_branch
      %32 = sbr.rel (0) target = $region13
    $region12: #{tpu_custom_call.1} parent=1 // pred_region
      %s34 = ssub.s32 128, 128
      %35 = vsyncadd [#allocation7], %s34
      %s37 = sshll.u32 [#allocation8], 4
      %s38 = int_to_ptr.vmem [resolvable:$true] %s37
      %40 = dma.hbm_to_vmem [thread:$0]  %s2, 128, %s38, [#allocation7]
    $region13: #{tpu_custom_call.1} parent=1 // pred_fallthru
      _
    // Predicated region
    $region14: #{tpu_custom_call.1} parent=1 // pred_check
      _
    $region15: #{tpu_custom_call.1} parent=1 // pred_check_branch
      %42 = sbr.rel (0) target = $region17
    $region16: #{tpu_custom_call.1} parent=1 // pred_region
      %43 = dma.done [#allocation4], 128
    $region17: #{tpu_custom_call.1} parent=1 // pred_fallthru
      _
    // Predicated region
    $region18: #{tpu_custom_call.1} parent=1 // pred_check
      _
    $region19: #{tpu_custom_call.1} parent=1 // pred_check_branch
      %45 = sbr.rel (0) target = $region21
    $region20: #{tpu_custom_call.1} parent=1 // pred_region
      %46 = dma.done [#allocation7], 128
    $region21: #{tpu_custom_call.1} parent=1 // pred_fallthru
      _
    // Predicated region
    $region22: #{tpu_custom_call.1} parent=1 // pred_check
      _
    $region23: #{tpu_custom_call.1} parent=1 // pred_check_branch
      %48 = sbr.rel (0) target = $region25
    $region24: #{tpu_custom_call.1} parent=1 // pred_region
      %49 = dma.done [#allocation7], 128
    $region25: #{tpu_custom_call.1} parent=1 // pred_fallthru
      _
    %p50 = scmp.eq.s32.totalorder 0, 0
    // Predicated region
    $region26: #{tpu_custom_call.1} parent=1 // pred_check
      %p51 = pneg %p50
    $region27: #{tpu_custom_call.1} parent=1 // pred_check_branch
      %53 = sbr.rel (%p51) target = $region29
    $region28: #{tpu_custom_call.1} parent=1 // pred_region
      %54 = vst [vmem:[#allocation2] sm:$0xff] 0.0
    $region29: #{tpu_custom_call.1} parent=1 // pred_fallthru
      _
    %v55 = vld [vmem:[#allocation3] sm:$0xff]
    %v56 = vld [vmem:[#allocation6] sm:$0xff]
    %v57 = vmax.f32 %v55, 0.0
    %v58 = vmul.f32 %v55, %v56
    %v59 = vsub.f32 %v57, %v58
    %v60 = vand.u32 2147483647, %v55
    %v61 = vsub.f32 0.0, %v60
    %v62 = vmul.f32 %v61, 1.442695
    %v63 = vpow.pop %v62
    %v64 = vadd.f32 %v63, 1.0
    %v65 = vlog2.pop %v64
    %v66 = vmul.f32 %v65, 0.6931472
    %v67 = vmul.f32 -0.5, %v63
    %v68 = vadd.f32 %v67, 1.0
    %v69 = vmul.f32 %v68, %v63
    %v70 = vand.u32 2147483647, %v63
    %vm71 = vcmp.lt.f32.partialorder %v70, 0.0004427343
    %v72 = vsel %vm71, %v69, %v66
    %v73 = vadd.f32 %v59, %v72
    %v74 = vld [vmem:[#allocation8] sm:$0xff]
    %v75 = vmul.f32 %v73, %v74
    %v76 = vlaneseq
    %v77 = vshrl.u32 %v76, 7
    %s78 = smul.u32 0, 8
    %v79 = vstv %s78
    %v80 = vadd.s32 %v77, %v79
    %v81 = vlaneseq
    %v82 = vand.u32 %v81, 127
    %v83 = vmul.u32 %v80, 128
    %v84 = vadd.s32 %v83, %v82
    %vm85 = vcmp.lt.s32.totalorder %v84, 512
    %v86 = vsel %vm85, %v75, 0.0
    %v87 = vld [vmem:[#allocation2] sm:$0xff]
    %v88 = vadd.f32 %v87, %v86
    %89 = vst [vmem:[#allocation2] sm:$0xff] %v88
    // Predicated region
    $region30: #{tpu_custom_call.1} parent=1 // pred_check
      %p90 = pneg %p50
    $region31: #{tpu_custom_call.1} parent=1 // pred_check_branch
      %92 = sbr.rel (%p90) target = $region33
    $region32: #{tpu_custom_call.1} parent=1 // pred_region
      %v93 = vld [vmem:[#allocation2] sm:$0xff]
      %94 = vadd.xlane.f32.xlu0 %v93
      %v95 = vpop.xlane.xlu0 %94
      %v96 = vrot.slane %v95, 4
      %v97 = vadd.f32 %v95, %v96
      %v98 = vrot.slane %v97, 2
      %v99 = vadd.f32 %v97, %v98
      %v100 = vrot.slane %v99, 1
      %v101 = vadd.f32 %v99, %v100
      %s102 = vtos %v101
      %s103 = smul.f32 %s102, 0.001953125
      %s104 = scalar_lea.smem [#allocation9], 0
      %105 = sst [smem:[%s104]] %s103
    $region33: #{tpu_custom_call.1} parent=1 // pred_fallthru
      _
    // Predicated region
    $region34: #{tpu_custom_call.1} parent=1 // pred_check
      _
    $region35: #{tpu_custom_call.1} parent=1 // pred_check_branch
      %107 = sbr.rel (0) target = $region37
    $region36: #{tpu_custom_call.1} parent=1 // pred_region
      %s109 = ssub.s32 16, 16
      %110 = vsyncadd [#allocation5], %s109
      %113 = dma.smem_to_hbm [#allocation9], 16, %s3, [#allocation5]
    $region37: #{tpu_custom_call.1} parent=1 // pred_fallthru
      _
    // Predicated region
    $region38: #{tpu_custom_call.1} parent=1 // pred_check
      _
    $region39: #{tpu_custom_call.1} parent=1 // pred_check_branch
      %115 = sbr.rel (0) target = $region41
    $region40: #{tpu_custom_call.1} parent=1 // pred_region
      %116 = dma.done [#allocation5], 16
    $region41: #{tpu_custom_call.1} parent=1 // pred_fallthru
      _
    %117 = sfence
    %118 = vsyncpa [#allocation4], 1
    %119 = vsyncpa [#allocation7], 1
    %120 = vsyncpa [#allocation5], 1

</llo_original>
